<compile_context>
chip_gen: v7x
topology: tpu7x:2x2x1
jax: 0.10.0
libtpu: 0.0.40
codegen_flags: <defaults>
</compile_context>

<pallas_src>
import math

import jax
import jax.numpy as jnp
from jax.experimental import pallas as pl
from jax.experimental.pallas import tpu as pltpu


def _round_up(x, m):
    return ((x + m - 1) // m) * m


def _cdiv(a, b):
    return -(-a // b)


def _pairwise_dot_kernel(x_ref, wbd_ref, s_ref, o_ref):
    # x_ref: (tile_rows, L). Each row packs R vertices, each as interleaved
    # [re_0, im_0, re_1, im_1, ...] channels (bit-identical to the (V, C, 2) layout).
    x = x_ref[...]
    # Fused complex-linear layer: one (tile, L) x (L, L) matmul produces the
    # interleaved [b_re_k, b_im_k, ...] for every packed vertex.
    b = jnp.dot(x, wbd_ref[...], preferred_element_type=jnp.float32)
    # Pairwise dot: elementwise product, then sum adjacent (re, im) lanes per
    # channel via a 0/1 selection matmul -> lane-dense (tile, R*C) output.
    prod = x.astype(jnp.float32) * b
    dots = jnp.dot(prod, s_ref[...], preferred_element_type=jnp.float32)
    o_ref[...] = jnp.tanh(dots).astype(o_ref.dtype)


def pairwise_dot(vectors, w_re, w_im, *, target_tile_rows=1024):
    """vectors: (V, C, 2); w_re, w_im: (C, C) nn.Linear weights (out, in)."""
    V, C, two = vectors.shape
    assert two == 2
    dt = vectors.dtype

    # --- lane-dense packing parameters --------------------------------------
    # R vertices per dense row so both input rows (R*2C) and output rows (R*C)
    # are multiples of 128 lanes.
    R = 128 // math.gcd(128, C)
    L = R * 2 * C            # dense input row width  (multiple of 256)
    OW = R * C               # dense output row width (multiple of 128)

    # --- weights: built once in the wrapper (tiny, resident in VMEM) --------
    wrT = w_re.T.astype(jnp.float32)
    wiT = w_im.T.astype(jnp.float32)
    # Interleaved complex-linear weight: x_interleaved @ Wint == interleaved [b_re|b_im]
    Wint = jnp.zeros((2 * C, 2 * C), jnp.float32)
    Wint = Wint.at[0::2, 0::2].set(wrT)     # re -> b_re
    Wint = Wint.at[1::2, 0::2].set(-wiT)    # im -> b_re
    Wint = Wint.at[0::2, 1::2].set(wiT)     # re -> b_im
    Wint = Wint.at[1::2, 1::2].set(wrT)     # im -> b_im
    Wbd = jnp.kron(jnp.eye(R, dtype=jnp.float32), Wint)          # (L, L) block-diag
    # Selection matrix summing each (re*b_re, im*b_im) lane pair into one channel.
    S0 = jnp.repeat(jnp.eye(C, dtype=jnp.float32), 2, axis=0)    # (2C, C)
    S = jnp.kron(jnp.eye(R, dtype=jnp.float32), S0)              # (L, OW)

    # --- tiling: big tiles, capped by a VMEM budget, grid >= 2 when possible -
    vmem_budget_rows = max(8, (((2 * 1024 * 1024) // (L * 4)) // 8) * 8)
    target = max(8, min(target_tile_rows, vmem_budget_rows))

    Vd_raw = _cdiv(V, R)                       # dense rows actually needed
    tile_rows = min(target, _round_up(Vd_raw, 8))
    if Vd_raw > 8 and _cdiv(Vd_raw, tile_rows) < 2:
        # keep at least 2 grid steps so megacore / v7x's two TCs both get work
        tile_rows = max(8, _round_up(_cdiv(Vd_raw, 2), 8))
    Vd = _round_up(Vd_raw, tile_rows)
    grid = (Vd // tile_rows,)
    V_pad = Vd * R

    # --- free layout plumbing: (V, C, 2) row-major == (V, 2C) == (Vd, L) -----
    x2 = vectors.reshape(V, 2 * C)
    if V_pad != V:
        x2 = jnp.pad(x2, ((0, V_pad - V), (0, 0)))   # only when V is unaligned
    xd = x2.reshape(Vd, L)

    out_dense = pl.pallas_call(
        _pairwise_dot_kernel,
        out_shape=jax.ShapeDtypeStruct((Vd, OW), dt),
        grid_spec=pltpu.PrefetchScalarGridSpec(
            num_scalar_prefetch=0,
            grid=grid,
            in_specs=[
                pl.BlockSpec((tile_rows, L), lambda i: (i, 0)),   # packed activations
                pl.BlockSpec((L, L), lambda i: (0, 0)),           # Wbd (resident)
                pl.BlockSpec((L, OW), lambda i: (0, 0)),          # S   (resident)
            ],
            out_specs=pl.BlockSpec((tile_rows, OW), lambda i: (i, 0)),
        ),
        compiler_params=pltpu.CompilerParams(
            dimension_semantics=("parallel",),
        ),
    )(xd, Wbd, S)

    out = out_dense.reshape(V_pad, C)
    if V_pad != V:
        out = out[:V]
    return out


def pairwise_dot_ref(vectors, w_re, w_im):
    x_re = vectors[..., 0]
    x_im = vectors[..., 1]
    b_re = x_re @ w_re.T - x_im @ w_im.T
    b_im = x_im @ w_re.T + x_re @ w_im.T
    return jnp.tanh(x_re * b_re + x_im * b_im)


if __name__ == "__main__":
    key = jax.random.PRNGKey(0)
    k_vec, k_wre, k_wim, k_vec2 = jax.random.split(key, 4)

    # Small shapes consistent with the module: V vertices, C channels.
    V, C = 128, 32
    vectors = jax.random.normal(k_vec, (V, C, 2), dtype=jnp.float32)
    bound = 1.0 / (C ** 0.5)   # nn.Linear(C, C, bias=False) init range
    w_re = jax.random.uniform(k_wre, (C, C), jnp.float32, -bound, bound)
    w_im = jax.random.uniform(k_wim, (C, C), jnp.float32, -bound, bound)

    out = jax.block_until_ready(pairwise_dot(vectors, w_re, w_im))
    ref = pairwise_dot_ref(vectors, w_re, w_im)
    assert out.shape == (V, C)
    assert jnp.allclose(out, ref, atol=3e-5, rtol=1e-5), "mismatch vs reference"

    # Also exercise a vertex count that is not tile/pack aligned (padding path).
    V2 = 100
    vectors2 = jax.random.normal(k_vec2, (V2, C, 2), dtype=jnp.float32)
    out2 = jax.block_until_ready(pairwise_dot(vectors2, w_re, w_im))
    ref2 = pairwise_dot_ref(vectors2, w_re, w_im)
    assert out2.shape == (V2, C)
    assert jnp.allclose(out2, ref2, atol=3e-5, rtol=1e-5), "mismatch vs reference (padded)"

    print("KERNEL_OK")
</pallas_src>

<mosaic_0001>
module attributes {stable_mosaic.version = 11 : i64} {
  func.func @_pairwise_dot_kernel(%arg0: i32, %arg1: memref<16x256xf32, #tpu.memory_space<vmem>>, %arg2: memref<256x256xf32, #tpu.memory_space<vmem>>, %arg3: memref<256x128xf32, #tpu.memory_space<vmem>>, %arg4: memref<16x128xf32, #tpu.memory_space<vmem>>) attributes {dimension_semantics = [#tpu.dimension_semantics<parallel>], iteration_bounds = array<i64: 2>, scalar_prefetch = 0 : i64, scratch_operands = 0 : i64, tpu.core_type = #tpu.core_type<tc>, window_params = [{transform_indices = @transform_0, window_bounds = array<i64: 16, 256>}, {pipeline_mode = #tpu.pipeline_mode<synchronous>, transform_indices = @transform_1, window_bounds = array<i64: 256, 256>}, {pipeline_mode = #tpu.pipeline_mode<synchronous>, transform_indices = @transform_2, window_bounds = array<i64: 256, 128>}, {transform_indices = @transform_3, window_bounds = array<i64: 16, 128>}]} {
    %c0 = arith.constant 0 : index
    %c0_0 = arith.constant 0 : index
    %0 = vector.load %arg1[%c0, %c0_0] : memref<16x256xf32, #tpu.memory_space<vmem>>, vector<16x256xf32>
    %c0_1 = arith.constant 0 : index
    %c0_2 = arith.constant 0 : index
    %1 = vector.load %arg2[%c0_1, %c0_2] : memref<256x256xf32, #tpu.memory_space<vmem>>, vector<256x256xf32>
    %cst = arith.constant dense<0.000000e+00> : vector<16x256xf32>
    %2 = tpu.matmul %0, %1, %cst {dimension_numbers = #tpu.dot_dimension_numbers<[1], [0], [0], [1], [0, 0, 1, 1], [], []>} : vector<16x256xf32>, vector<256x256xf32>, vector<16x256xf32> -> vector<16x256xf32>
    %3 = arith.mulf %0, %2 : vector<16x256xf32>
    %c0_3 = arith.constant 0 : index
    %c0_4 = arith.constant 0 : index
    %4 = vector.load %arg3[%c0_3, %c0_4] : memref<256x128xf32, #tpu.memory_space<vmem>>, vector<256x128xf32>
    %cst_5 = arith.constant dense<0.000000e+00> : vector<16x128xf32>
    %5 = tpu.matmul %3, %4, %cst_5 {dimension_numbers = #tpu.dot_dimension_numbers<[1], [0], [0], [1], [0, 0, 1, 1], [], []>} : vector<16x256xf32>, vector<256x128xf32>, vector<16x128xf32> -> vector<16x128xf32>
    %6 = math.tanh %5 : vector<16x128xf32>
    %c0_6 = arith.constant 0 : index
    %c0_7 = arith.constant 0 : index
    %7 = vector.load %arg4[%c0_6, %c0_7] : memref<16x128xf32, #tpu.memory_space<vmem>>, vector<16x128xf32>
    tpu.vector_store %arg4[%c0_6, %c0_7], %6 {strides = array<i32>} : memref<16x128xf32, #tpu.memory_space<vmem>>, vector<16x128xf32>,
    return
  }
  func.func @transform_0(%arg0: i32) -> (i32, i32) {
    %c0_i32 = arith.constant 0 : i32
    %c0_i32_0 = arith.constant 0 : i32
    return %arg0, %c0_i32 : i32, i32
  }
  func.func @transform_1(%arg0: i32) -> (i32, i32) {
    %c0_i32 = arith.constant 0 : i32
    %c0_i32_0 = arith.constant 0 : i32
    %c0_i32_1 = arith.constant 0 : i32
    return %c0_i32, %c0_i32_0 : i32, i32
  }
  func.func @transform_2(%arg0: i32) -> (i32, i32) {
    %c0_i32 = arith.constant 0 : i32
    %c0_i32_0 = arith.constant 0 : i32
    %c0_i32_1 = arith.constant 0 : i32
    return %c0_i32, %c0_i32_0 : i32, i32
  }
  func.func @transform_3(%arg0: i32) -> (i32, i32) {
    %c0_i32 = arith.constant 0 : i32
    %c0_i32_0 = arith.constant 0 : i32
    return %arg0, %c0_i32 : i32, i32
  }
}

</mosaic_0001>

<llo_original>
// kernel: tpu_custom_call.1
$region0: #{tpu_custom_call.1}
  #allocation0 [shape = 'u32[]', space=smem, size = 0x4, offset = 0x4, fixed_abs, tag = 'smem constant byte address 0x4 - core index']
  #allocation1 [shape = 'u32[144,128]{1,0:T(1,128)}', space=vmem, size = 0x12000, scoped, tag = 'internal scratch']
  %s0 = inlined_call_operand.hbm [shape: f32[32,256], index: 0, kind: input, shape index: {}]
  %s1 = inlined_call_operand.hbm [shape: f32[256,256], index: 1, kind: input, shape index: {}]
  %s2 = inlined_call_operand.hbm [shape: f32[256,128], index: 2, kind: input, shape index: {}]
  %s3 = inlined_call_operand.hbm [shape: f32[32,128], index: 3, kind: output, shape index: {}]
  %s4 = sld [smem:[#allocation0]]
  $region57: #{tpu_custom_call.1} parent=0
    _
  %s6 = ssub.s32 1, %s4
  %s7 = scalar_select 0, %s6, %s4
  $region1: #{tpu_custom_call.1} parent=0
    #allocation2 [shape = 'u8[32768]{0}', space=vmem, size = 0x8000, scoped, tag = 'input window, operand 0']
    #allocation3 [shape = 's32[2]{0}', space=sflag, size = 0x8, scoped, tag = 'scoped memory for tpu_custom_call.1']
    #allocation4 [shape = 's32[2]{0}', space=sflag, size = 0x8, scoped, tag = 'scoped memory for tpu_custom_call.1']
    #allocation5 [shape = 'u8[262144]{0}', space=vmem, size = 0x40000, scoped, tag = 'input window, operand 1, single buffered']
    #allocation6 [shape = 's32[1]{0}', space=sflag, size = 0x4, scoped, tag = 'scoped memory for tpu_custom_call.1']
    #allocation7 [shape = 'u8[131072]{0}', space=vmem, size = 0x20000, scoped, tag = 'input window, operand 2, single buffered']
    #allocation8 [shape = 'u8[16384]{0}', space=vmem, size = 0x4000, scoped, tag = 'output window, operand 0']
    %8 = vsyncpa [#allocation3], 0
    %s9 = scalar_lea.sflag [#allocation3], 1
    %10 = vsyncpa %s9, 0
    %11 = vsyncpa [#allocation6], 0
    %12 = vsyncpa [#allocation4], 0
    %s13 = scalar_lea.sflag [#allocation4], 1
    %14 = vsyncpa %s13, 0
    loop: start=0, step=1, limit=4
    $region2: #{tpu_custom_call.1} parent=1 // loop_pre_header
      _
    $region3: #{tpu_custom_call.1} parent=1 // loop_header
      %s16 = sphi 0, %s20
      %p17 = scmp.ge.s32.totalorder %s16, 4
      %s26 = sphi 0, %s28
      %s29 = sphi 0, %s26
      %s30 = sphi 0, %s29
      %s46 = sphi 0, %s30
      %s50 = sphi 0, %s50
      %s52 = sphi 0, %s50
      %s53 = sphi 0, %s52
      %s67 = sphi 0, %s53
      %s71 = sphi 0, %s71
      %s73 = sphi 0, %s71
      %s74 = sphi 0, %s73
      %s88 = sphi 0, %s74
      %s94 = sphi 0, %s96
      %s97 = sphi 0, %s94
      %s98 = sphi 0, %s97
      %s114 = sphi 0, %s98
    $region4: #{tpu_custom_call.1} parent=1 // loop_header_branch
      %19 = sbr.rel (%p17) target = $region8
    $region5: #{tpu_custom_call.1} parent=1 // loop_body
      %s21 = ssub.s32 %s16, 1
      %s22 = ssub.s32 %s16, 2
      %s23 = sadd.s32 %s16, 1
      %s24 = ssub.s32 %s16, %s23
      %p25 = scmp.eq.s32.totalorder %s24, 0
      %s27 = sadd.s32 %s26, 1
      %s28 = scalar_select %p25, %s26, %s27
      %p31 = pneg %p25
      %p32 = scmp.eq.s32.totalorder %s16, 1
      %p33 = por %p31, %p32
      %p34 = scmp.ne.s32.totalorder %s26, %s29
      %p35 = scmp.eq.s32.totalorder %s16, 0
      %p36 = por %p34, %p35
      %p37 = scmp.ne.s32.totalorder %s26, %s29
      %p38 = scmp.eq.s32.totalorder %s21, 1
      %p39 = por %p37, %p38
      %p40 = scmp.ne.s32.totalorder %s29, %s30
      %p41 = scmp.eq.s32.totalorder %s21, 0
      %p42 = por %p40, %p41
      %p43 = scmp.ne.s32.totalorder %s29, %s30
      %p44 = scmp.eq.s32.totalorder %s22, 1
      %p45 = por %p43, %p44
      %p47 = scmp.ne.s32.totalorder %s30, %s46
      %p48 = scmp.eq.s32.totalorder %s22, 0
      %p49 = por %p47, %p48
      %s51 = sadd.s32 %s50, 1
      %p54 = scmp.eq.s32.totalorder %s16, 1
      %p55 = scmp.ne.s32.totalorder %s50, %s52
      %p56 = scmp.eq.s32.totalorder %s16, 0
      %p57 = por %p55, %p56
      %p58 = scmp.ne.s32.totalorder %s50, %s52
      %p59 = scmp.eq.s32.totalorder %s21, 1
      %p60 = por %p58, %p59
      %p61 = scmp.ne.s32.totalorder %s52, %s53
      %p62 = scmp.eq.s32.totalorder %s21, 0
      %p63 = por %p61, %p62
      %p64 = scmp.ne.s32.totalorder %s52, %s53
      %p65 = scmp.eq.s32.totalorder %s22, 1
      %p66 = por %p64, %p65
      %p68 = scmp.ne.s32.totalorder %s53, %s67
      %p69 = scmp.eq.s32.totalorder %s22, 0
      %p70 = por %p68, %p69
      %s72 = sadd.s32 %s71, 1
      %p75 = scmp.eq.s32.totalorder %s16, 1
      %p76 = scmp.ne.s32.totalorder %s71, %s73
      %p77 = scmp.eq.s32.totalorder %s16, 0
      %p78 = por %p76, %p77
      %p79 = scmp.ne.s32.totalorder %s71, %s73
      %p80 = scmp.eq.s32.totalorder %s21, 1
      %p81 = por %p79, %p80
      %p82 = scmp.ne.s32.totalorder %s73, %s74
      %p83 = scmp.eq.s32.totalorder %s21, 0
      %p84 = por %p82, %p83
      %p85 = scmp.ne.s32.totalorder %s73, %s74
      %p86 = scmp.eq.s32.totalorder %s22, 1
      %p87 = por %p85, %p86
      %p89 = scmp.ne.s32.totalorder %s74, %s88
      %p90 = scmp.eq.s32.totalorder %s22, 0
      %p91 = por %p89, %p90
      %s92 = ssub.s32 %s16, %s23
      %p93 = scmp.eq.s32.totalorder %s92, 0
      %s95 = sadd.s32 %s94, 1
      %s96 = scalar_select %p93, %s94, %s95
      %p99 = pneg %p93
      %p100 = scmp.eq.s32.totalorder %s16, 1
      %p101 = por %p99, %p100
      %p102 = scmp.ne.s32.totalorder %s94, %s97
      %p103 = scmp.eq.s32.totalorder %s16, 0
      %p104 = por %p102, %p103
      %p105 = scmp.ne.s32.totalorder %s94, %s97
      %p106 = scmp.eq.s32.totalorder %s21, 1
      %p107 = por %p105, %p106
      %p108 = scmp.ne.s32.totalorder %s97, %s98
      %p109 = scmp.eq.s32.totalorder %s21, 0
      %p110 = por %p108, %p109
      %p111 = scmp.ne.s32.totalorder %s97, %s98
      %p112 = scmp.eq.s32.totalorder %s22, 1
      %p113 = por %p111, %p112
      %p115 = scmp.ne.s32.totalorder %s98, %s114
      %p116 = scmp.eq.s32.totalorder %s22, 0
      %p117 = por %p115, %p116
      %p118 = scmp.le.s32.totalorder 1, %s16
      %p119 = scmp.lt.s32.totalorder %s16, 3
      %p120 = pnand %p118, %p119
      %p121 = pneg %p120
      // Predicated region
      $region9: #{tpu_custom_call.1} parent=5 // pred_check
        _
      $region10: #{tpu_custom_call.1} parent=5 // pred_check_branch
        %123 = sbr.rel (%p120) target = $region12
      $region11: #{tpu_custom_call.1} parent=5 // pred_region
        %s124 = ssub.s32 %s16, 1
        // Predicated region
        $region13: #{tpu_custom_call.1} parent=11 // pred_check
          %p125 = pneg %p63
        $region14: #{tpu_custom_call.1} parent=11 // pred_check_branch
          %127 = sbr.rel (%p125) target = $region16
        $region15: #{tpu_custom_call.1} parent=11 // pred_region
          %s129 = ssub.s32 8192, 8192
          %130 = vsyncadd [#allocation6], %s129
          %s131 = sshll.u32 [#allocation5], 4
          %s132 = int_to_ptr.vmem [resolvable:$true] %s131
          %137 = dma.hbm_to_vmem [thread:$0]  %s1, 8192, %s132, [#allocation6], 256, 256, 16
        $region16: #{tpu_custom_call.1} parent=11 // pred_fallthru
          _
        // Predicated region
        $region17: #{tpu_custom_call.1} parent=11 // pred_check
          %p138 = pneg %p84
        $region18: #{tpu_custom_call.1} parent=11 // pred_check_branch
          %140 = sbr.rel (%p138) target = $region20
        $region19: #{tpu_custom_call.1} parent=11 // pred_region
          %s142 = ssub.s32 4096, 4096
          %143 = vsyncadd [#allocation6], %s142
          %s144 = sshll.u32 [#allocation7], 4
          %s145 = int_to_ptr.vmem [resolvable:$true] %s144
          %150 = dma.hbm_to_vmem [thread:$0]  %s2, 4096, %s145, [#allocation6], 128, 128, 8
        $region20: #{tpu_custom_call.1} parent=11 // pred_fallthru
          _
      $region12: #{tpu_custom_call.1} parent=5 // pred_fallthru
        _
      %p151 = scmp.lt.s32.totalorder %s16, 2
      // Predicated region
      $region21: #{tpu_custom_call.1} parent=5 // pred_check
        %p152 = pneg %p151
      $region22: #{tpu_custom_call.1} parent=5 // pred_check_branch
        %154 = sbr.rel (%p152) target = $region24
      $region23: #{tpu_custom_call.1} parent=5 // pred_region
        // Predicated region
        $region25: #{tpu_custom_call.1} parent=23 // pred_check
          %p155 = pneg %p36
        $region26: #{tpu_custom_call.1} parent=23 // pred_check_branch
          %157 = sbr.rel (%p155) target = $region28
        $region27: #{tpu_custom_call.1} parent=23 // pred_region
          %s158 = sand.u32 %s26, 1
          %s159 = scalar_lea.sflag [#allocation3], %s158
          %s160 = sand.u32 %s26, 1
          %s161 = smul.addr %s160, 32
          %s162 = scalar_lea.vmem [#allocation2], %s161
          %s163 = smul.u32 2, %s16
          %s165 = ssub.s32 512, 512
          %166 = vsyncadd %s159, %s165
          %s167 = smul.addr %s163, 2
          %s168 = smul.addr %s167, 128
          %s169 = scalar_lea.hbm %s0, %s168
          %s170 = sshll.u32 %s162, 4
          %s171 = int_to_ptr.vmem [resolvable:$true] %s170
          %176 = dma.hbm_to_vmem [thread:$0]  %s169, 512, %s171, %s159, 256, 256, 16
        $region28: #{tpu_custom_call.1} parent=23 // pred_fallthru
          _
      $region24: #{tpu_custom_call.1} parent=5 // pred_fallthru
        _
      %p177 = scmp.le.s32.totalorder 1, %s16
      %p178 = scmp.lt.s32.totalorder %s16, 3
      %p179 = pnand %p177, %p178
      %p180 = pneg %p179
      // Predicated region
      $region29: #{tpu_custom_call.1} parent=5 // pred_check
        _
      $region30: #{tpu_custom_call.1} parent=5 // pred_check_branch
        %182 = sbr.rel (%p179) target = $region32
      $region31: #{tpu_custom_call.1} parent=5 // pred_region
        %s183 = ssub.s32 %s16, 1
        %s184 = sand.u32 %s29, 1
        %s185 = scalar_lea.sflag [#allocation3], %s184
        %s186 = sand.u32 %s29, 1
        %s187 = smul.addr %s186, 32
        %s188 = scalar_lea.vmem [#allocation2], %s187
        // Predicated region
        $region33: #{tpu_custom_call.1} parent=31 // pred_check
          %p189 = pneg %p42
        $region34: #{tpu_custom_call.1} parent=31 // pred_check_branch
          %191 = sbr.rel (%p189) target = $region36
        $region35: #{tpu_custom_call.1} parent=31 // pred_region
          %192 = dma.done %s185, 512
        $region36: #{tpu_custom_call.1} parent=31 // pred_fallthru
          _
        // Predicated region
        $region37: #{tpu_custom_call.1} parent=31 // pred_check
          %p193 = pneg %p63
        $region38: #{tpu_custom_call.1} parent=31 // pred_check_branch
          %195 = sbr.rel (%p193) target = $region40
        $region39: #{tpu_custom_call.1} parent=31 // pred_region
          %196 = dma.done [#allocation6], 8192
        $region40: #{tpu_custom_call.1} parent=31 // pred_fallthru
          _
        // Predicated region
        $region41: #{tpu_custom_call.1} parent=31 // pred_check
          %p197 = pneg %p84
        $region42: #{tpu_custom_call.1} parent=31 // pred_check_branch
          %199 = sbr.rel (%p197) target = $region44
        $region43: #{tpu_custom_call.1} parent=31 // pred_region
          %200 = dma.done [#allocation6], 4096
        $region44: #{tpu_custom_call.1} parent=31 // pred_fallthru
          _
        %s201 = sand.u32 %s29, 1
        %s202 = scalar_lea.sflag [#allocation3], %s201
        %s203 = sand.u32 %s29, 1
        %s204 = smul.addr %s203, 32
        %s205 = scalar_lea.vmem [#allocation2], %s204
        %p206 = pneg %p42
        %p207 = pneg %p39
        %p208 = pneg %p63
        %p209 = pneg %p60
        %p210 = pneg %p84
        %p211 = pneg %p81
        %p212 = pneg %p110
        %p213 = pneg %p107
        %s214 = sand.u32 %s97, 1
        %s215 = scalar_lea.sflag [#allocation4], %s214
        %s216 = sand.u32 %s97, 1
        %s217 = smul.addr %s216, 16
        %s218 = scalar_lea.vmem [#allocation8], %s217
        %s219 = smul.u32 2, %s21
        %s220 = smul.u32 2, %s21
        %v221 = vld [vmem:[%s188] sm:$0xff]
        %v222 = vld [vmem:[%s188 + $0x8] sm:$0xff]
        %v223 = vld [vmem:[%s188 + $0x10] sm:$0xff]
        %v224 = vld [vmem:[%s188 + $0x18] sm:$0xff]
        %v225 = vld [vmem:[#allocation5] sm:$0xff]
        %v226 = vld [vmem:[#allocation5 + $0x8] sm:$0xff]
        %v227 = vld [vmem:[#allocation5 + $0x10] sm:$0xff]
        %v228 = vld [vmem:[#allocation5 + $0x18] sm:$0xff]
        %v229 = vld [vmem:[#allocation5 + $0x20] sm:$0xff]
        %v230 = vld [vmem:[#allocation5 + $0x28] sm:$0xff]
        %v231 = vld [vmem:[#allocation5 + $0x30] sm:$0xff]
        %v232 = vld [vmem:[#allocation5 + $0x38] sm:$0xff]
        %v233 = vld [vmem:[#allocation5 + $0x40] sm:$0xff]
        %v234 = vld [vmem:[#allocation5 + $0x48] sm:$0xff]
        %v235 = vld [vmem:[#allocation5 + $0x50] sm:$0xff]
        %v236 = vld [vmem:[#allocation5 + $0x58] sm:$0xff]
        %v237 = vld [vmem:[#allocation5 + $0x60] sm:$0xff]
        %v238 = vld [vmem:[#allocation5 + $0x68] sm:$0xff]
        %v239 = vld [vmem:[#allocation5 + $0x70] sm:$0xff]
        %v240 = vld [vmem:[#allocation5 + $0x78] sm:$0xff]
        %v241 = vld [vmem:[#allocation5 + $0x80] sm:$0xff]
        %v242 = vld [vmem:[#allocation5 + $0x88] sm:$0xff]
        %v243 = vld [vmem:[#allocation5 + $0x90] sm:$0xff]
        %v244 = vld [vmem:[#allocation5 + $0x98] sm:$0xff]
        %v245 = vld [vmem:[#allocation5 + $0xa0] sm:$0xff]
        %v246 = vld [vmem:[#allocation5 + $0xa8] sm:$0xff]
        %v247 = vld [vmem:[#allocation5 + $0xb0] sm:$0xff]
        %v248 = vld [vmem:[#allocation5 + $0xb8] sm:$0xff]
        %v249 = vld [vmem:[#allocation5 + $0xc0] sm:$0xff]
        %v250 = vld [vmem:[#allocation5 + $0xc8] sm:$0xff]
        %v251 = vld [vmem:[#allocation5 + $0xd0] sm:$0xff]
        %v252 = vld [vmem:[#allocation5 + $0xd8] sm:$0xff]
        %v253 = vld [vmem:[#allocation5 + $0xe0] sm:$0xff]
        %v254 = vld [vmem:[#allocation5 + $0xe8] sm:$0xff]
        %v255 = vld [vmem:[#allocation5 + $0xf0] sm:$0xff]
        %v256 = vld [vmem:[#allocation5 + $0xf8] sm:$0xff]
        %v257 = vld [vmem:[#allocation5 + $0x100] sm:$0xff]
        %v258 = vld [vmem:[#allocation5 + $0x108] sm:$0xff]
        %v259 = vld [vmem:[#allocation5 + $0x110] sm:$0xff]
        %v260 = vld [vmem:[#allocation5 + $0x118] sm:$0xff]
        %v261 = vld [vmem:[#allocation5 + $0x120] sm:$0xff]
        %v262 = vld [vmem:[#allocation5 + $0x128] sm:$0xff]
        %v263 = vld [vmem:[#allocation5 + $0x130] sm:$0xff]
        %v264 = vld [vmem:[#allocation5 + $0x138] sm:$0xff]
        %v265 = vld [vmem:[#allocation5 + $0x140] sm:$0xff]
        %v266 = vld [vmem:[#allocation5 + $0x148] sm:$0xff]
        %v267 = vld [vmem:[#allocation5 + $0x150] sm:$0xff]
        %v268 = vld [vmem:[#allocation5 + $0x158] sm:$0xff]
        %v269 = vld [vmem:[#allocation5 + $0x160] sm:$0xff]
        %v270 = vld [vmem:[#allocation5 + $0x168] sm:$0xff]
        %v271 = vld [vmem:[#allocation5 + $0x170] sm:$0xff]
        %v272 = vld [vmem:[#allocation5 + $0x178] sm:$0xff]
        %v273 = vld [vmem:[#allocation5 + $0x180] sm:$0xff]
        %v274 = vld [vmem:[#allocation5 + $0x188] sm:$0xff]
        %v275 = vld [vmem:[#allocation5 + $0x190] sm:$0xff]
        %v276 = vld [vmem:[#allocation5 + $0x198] sm:$0xff]
        %v277 = vld [vmem:[#allocation5 + $0x1a0] sm:$0xff]
        %v278 = vld [vmem:[#allocation5 + $0x1a8] sm:$0xff]
        %v279 = vld [vmem:[#allocation5 + $0x1b0] sm:$0xff]
        %v280 = vld [vmem:[#allocation5 + $0x1b8] sm:$0xff]
        %v281 = vld [vmem:[#allocation5 + $0x1c0] sm:$0xff]
        %v282 = vld [vmem:[#allocation5 + $0x1c8] sm:$0xff]
        %v283 = vld [vmem:[#allocation5 + $0x1d0] sm:$0xff]
        %v284 = vld [vmem:[#allocation5 + $0x1d8] sm:$0xff]
        %v285 = vld [vmem:[#allocation5 + $0x1e0] sm:$0xff]
        %v286 = vld [vmem:[#allocation5 + $0x1e8] sm:$0xff]
        %v287 = vld [vmem:[#allocation5 + $0x1f0] sm:$0xff]
        %v288 = vld [vmem:[#allocation5 + $0x1f8] sm:$0xff]
        %289 = vmatprep.subr.mxu0 %v226
        %290 = vmatpush1.msra.mxu0 %v225
        %291 = vmatprep.subr.mxu0 %v228
        %292 = vmatpush1.msra.mxu0 %v227
        %293 = vmatprep.subr.mxu0 %v230
        %294 = vmatpush1.msra.mxu0 %v229
        %295 = vmatprep.subr.mxu0 %v232
        %296 = vmatpush1.msra.mxu0 %v231
        %297 = vmatprep.subr.mxu0 %v234
        %298 = vmatpush1.msra.mxu0 %v233
        %299 = vmatprep.subr.mxu0 %v236
        %300 = vmatpush1.msra.mxu0 %v235
        %301 = vmatprep.subr.mxu0 %v238
        %302 = vmatpush1.msra.mxu0 %v237
        %303 = vmatprep.subr.mxu0 %v240
        %304 = vmatpush1.msra.mxu0 %v239
        %305 = vmatprep.subr.mxu0 %v242
        %306 = vmatpush1.msra.mxu0 %v241
        %307 = vmatprep.subr.mxu0 %v244
        %308 = vmatpush1.msra.mxu0 %v243
        %309 = vmatprep.subr.mxu0 %v246
        %310 = vmatpush1.msra.mxu0 %v245
        %311 = vmatprep.subr.mxu0 %v248
        %312 = vmatpush1.msra.mxu0 %v247
        %313 = vmatprep.subr.mxu0 %v250
        %314 = vmatpush1.msra.mxu0 %v249
        %315 = vmatprep.subr.mxu0 %v252
        %316 = vmatpush1.msra.mxu0 %v251
        %317 = vmatprep.subr.mxu0 %v254
        %318 = vmatpush1.msra.mxu0 %v253
        %319 = vmatprep.subr.mxu0 %v256
        %320 = vmatpush1.msra.mxu0 %v255
        %321 = vmatprep.subr.mxu0 %v258
        %322 = vmatpush1.msra.mxu0 %v257
        %323 = vmatprep.subr.mxu0 %v260
        %324 = vmatpush1.msra.mxu0 %v259
        %325 = vmatprep.subr.mxu0 %v262
        %326 = vmatpush1.msra.mxu0 %v261
        %327 = vmatprep.subr.mxu0 %v264
        %328 = vmatpush1.msra.mxu0 %v263
        %329 = vmatprep.subr.mxu0 %v266
        %330 = vmatpush1.msra.mxu0 %v265
        %331 = vmatprep.subr.mxu0 %v268
        %332 = vmatpush1.msra.mxu0 %v267
        %333 = vmatprep.subr.mxu0 %v270
        %334 = vmatpush1.msra.mxu0 %v269
        %335 = vmatprep.subr.mxu0 %v272
        %336 = vmatpush1.msra.mxu0 %v271
        %337 = vmatprep.subr.mxu0 %v274
        %338 = vmatpush1.msra.mxu0 %v273
        %339 = vmatprep.subr.mxu0 %v276
        %340 = vmatpush1.msra.mxu0 %v275
        %341 = vmatprep.subr.mxu0 %v278
        %342 = vmatpush1.msra.mxu0 %v277
        %343 = vmatprep.subr.mxu0 %v280
        %344 = vmatpush1.msra.mxu0 %v279
        %345 = vmatprep.subr.mxu0 %v282
        %346 = vmatpush1.msra.mxu0 %v281
        %347 = vmatprep.subr.mxu0 %v284
        %348 = vmatpush1.msra.mxu0 %v283
        %349 = vmatprep.subr.mxu0 %v286
        %350 = vmatpush1.msra.mxu0 %v285
        %351 = vmatprep.subr.mxu0 %v288
        %352 = vmatpush1.msra.mxu0 %v287
        %353 = vmatprep.mubr.f32.mxu0 %v222
        %354 = vmatmul.mubr.f32.gmra.mrb[0].mxu0 %v221
        %v355 = vpop.f32.mrb[0].mxu0
        %v356 = vadd.f32 0.0, %v355
        %v357 = vpop.f32.mrb[0].mxu0
        %v358 = vadd.f32 0.0, %v357
        %359 = vmatprep.mubr.f32.mxu0 %v224
        %360 = vmatmul.mubr.f32.gmra.mrb[0].mxu0 %v223
        %v361 = vpop.f32.mrb[0].mxu0
        %v362 = vadd.f32 0.0, %v361
        %v363 = vpop.f32.mrb[0].mxu0
        %v364 = vadd.f32 0.0, %v363
        %365 = vdwg.mxu0
        %v366 = vmul.f32 %v221, %v356
        %v367 = vmul.f32 %v222, %v358
        %v368 = vmul.f32 %v223, %v362
        %v369 = vmul.f32 %v224, %v364
        %v370 = vld [vmem:[#allocation7] sm:$0xff]
        %v371 = vld [vmem:[#allocation7 + $0x8] sm:$0xff]
        %v372 = vld [vmem:[#allocation7 + $0x10] sm:$0xff]
        %v373 = vld [vmem:[#allocation7 + $0x18] sm:$0xff]
        %v374 = vld [vmem:[#allocation7 + $0x20] sm:$0xff]
        %v375 = vld [vmem:[#allocation7 + $0x28] sm:$0xff]
        %v376 = vld [vmem:[#allocation7 + $0x30] sm:$0xff]
        %v377 = vld [vmem:[#allocation7 + $0x38] sm:$0xff]
        %v378 = vld [vmem:[#allocation7 + $0x40] sm:$0xff]
        %v379 = vld [vmem:[#allocation7 + $0x48] sm:$0xff]
        %v380 = vld [vmem:[#allocation7 + $0x50] sm:$0xff]
        %v381 = vld [vmem:[#allocation7 + $0x58] sm:$0xff]
        %v382 = vld [vmem:[#allocation7 + $0x60] sm:$0xff]
        %v383 = vld [vmem:[#allocation7 + $0x68] sm:$0xff]
        %v384 = vld [vmem:[#allocation7 + $0x70] sm:$0xff]
        %v385 = vld [vmem:[#allocation7 + $0x78] sm:$0xff]
        %v386 = vld [vmem:[#allocation7 + $0x80] sm:$0xff]
        %v387 = vld [vmem:[#allocation7 + $0x88] sm:$0xff]
        %v388 = vld [vmem:[#allocation7 + $0x90] sm:$0xff]
        %v389 = vld [vmem:[#allocation7 + $0x98] sm:$0xff]
        %v390 = vld [vmem:[#allocation7 + $0xa0] sm:$0xff]
        %v391 = vld [vmem:[#allocation7 + $0xa8] sm:$0xff]
        %v392 = vld [vmem:[#allocation7 + $0xb0] sm:$0xff]
        %v393 = vld [vmem:[#allocation7 + $0xb8] sm:$0xff]
        %v394 = vld [vmem:[#allocation7 + $0xc0] sm:$0xff]
        %v395 = vld [vmem:[#allocation7 + $0xc8] sm:$0xff]
        %v396 = vld [vmem:[#allocation7 + $0xd0] sm:$0xff]
        %v397 = vld [vmem:[#allocation7 + $0xd8] sm:$0xff]
        %v398 = vld [vmem:[#allocation7 + $0xe0] sm:$0xff]
        %v399 = vld [vmem:[#allocation7 + $0xe8] sm:$0xff]
        %v400 = vld [vmem:[#allocation7 + $0xf0] sm:$0xff]
        %v401 = vld [vmem:[#allocation7 + $0xf8] sm:$0xff]
        %402 = vmatprep.subr.mxu0 0.0
        %403 = vmatpush1.msra.mxu0 %v370
        %404 = vmatprep.subr.mxu0 0.0
        %405 = vmatpush1.msra.mxu0 %v371
        %406 = vmatprep.subr.mxu0 0.0
        %407 = vmatpush1.msra.mxu0 %v372
        %408 = vmatprep.subr.mxu0 0.0
        %409 = vmatpush1.msra.mxu0 %v373
        %410 = vmatprep.subr.mxu0 0.0
        %411 = vmatpush1.msra.mxu0 %v374
        %412 = vmatprep.subr.mxu0 0.0
        %413 = vmatpush1.msra.mxu0 %v375
        %414 = vmatprep.subr.mxu0 0.0
        %415 = vmatpush1.msra.mxu0 %v376
        %416 = vmatprep.subr.mxu0 0.0
        %417 = vmatpush1.msra.mxu0 %v377
        %418 = vmatprep.subr.mxu0 0.0
        %419 = vmatpush1.msra.mxu0 %v378
        %420 = vmatprep.subr.mxu0 0.0
        %421 = vmatpush1.msra.mxu0 %v379
        %422 = vmatprep.subr.mxu0 0.0
        %423 = vmatpush1.msra.mxu0 %v380
        %424 = vmatprep.subr.mxu0 0.0
        %425 = vmatpush1.msra.mxu0 %v381
        %426 = vmatprep.subr.mxu0 0.0
        %427 = vmatpush1.msra.mxu0 %v382
        %428 = vmatprep.subr.mxu0 0.0
        %429 = vmatpush1.msra.mxu0 %v383
        %430 = vmatprep.subr.mxu0 0.0
        %431 = vmatpush1.msra.mxu0 %v384
        %432 = vmatprep.subr.mxu0 0.0
        %433 = vmatpush1.msra.mxu0 %v385
        %434 = vmatprep.subr.mxu0 0.0
        %435 = vmatpush1.msra.mxu0 %v386
        %436 = vmatprep.subr.mxu0 0.0
        %437 = vmatpush1.msra.mxu0 %v387
        %438 = vmatprep.subr.mxu0 0.0
        %439 = vmatpush1.msra.mxu0 %v388
        %440 = vmatprep.subr.mxu0 0.0
        %441 = vmatpush1.msra.mxu0 %v389
        %442 = vmatprep.subr.mxu0 0.0
        %443 = vmatpush1.msra.mxu0 %v390
        %444 = vmatprep.subr.mxu0 0.0
        %445 = vmatpush1.msra.mxu0 %v391
        %446 = vmatprep.subr.mxu0 0.0
        %447 = vmatpush1.msra.mxu0 %v392
        %448 = vmatprep.subr.mxu0 0.0
        %449 = vmatpush1.msra.mxu0 %v393
        %450 = vmatprep.subr.mxu0 0.0
        %451 = vmatpush1.msra.mxu0 %v394
        %452 = vmatprep.subr.mxu0 0.0
        %453 = vmatpush1.msra.mxu0 %v395
        %454 = vmatprep.subr.mxu0 0.0
        %455 = vmatpush1.msra.mxu0 %v396
        %456 = vmatprep.subr.mxu0 0.0
        %457 = vmatpush1.msra.mxu0 %v397
        %458 = vmatprep.subr.mxu0 0.0
        %459 = vmatpush1.msra.mxu0 %v398
        %460 = vmatprep.subr.mxu0 0.0
        %461 = vmatpush1.msra.mxu0 %v399
        %462 = vmatprep.subr.mxu0 0.0
        %463 = vmatpush1.msra.mxu0 %v400
        %464 = vmatprep.subr.mxu0 0.0
        %465 = vmatpush1.msra.mxu0 %v401
        %466 = vmatprep.mubr.f32.mxu0 %v367
        %467 = vmatmul.mubr.f32.gmra.mrb[0].mxu0 %v366
        %v468 = vpop.f32.mrb[0].mxu0
        %v469 = vadd.f32 0.0, %v468
        %v470 = vpop.f32.mrb[0].mxu0
        %471 = vmatprep.mubr.f32.mxu0 %v369
        %472 = vmatmul.mubr.f32.gmra.mrb[0].mxu0 %v368
        %v473 = vpop.f32.mrb[0].mxu0
        %v474 = vadd.f32 0.0, %v473
        %v475 = vpop.f32.mrb[0].mxu0
        %476 = vdwg.mxu0
        %v477 = vtanh.pop %v469
        %v478 = vtanh.pop %v474
        %479 = vst [vmem:[%s218] sm:$0xff] %v477
        %480 = vst [vmem:[%s218 + $0x8] sm:$0xff] %v478
        %s481 = sand.u32 %s97, 1
        %s482 = scalar_lea.sflag [#allocation4], %s481
        %s483 = sand.u32 %s97, 1
        %s484 = smul.addr %s483, 16
        %s485 = scalar_lea.vmem [#allocation8], %s484
        // Predicated region
        $region45: #{tpu_custom_call.1} parent=31 // pred_check
          %p486 = pneg %p107
        $region46: #{tpu_custom_call.1} parent=31 // pred_check_branch
          %488 = sbr.rel (%p486) target = $region48
        $region47: #{tpu_custom_call.1} parent=31 // pred_region
          %s489 = smul.u32 2, %s21
          %s491 = ssub.s32 256, 256
          %492 = vsyncadd %s482, %s491
          %s493 = smul.addr %s489, 128
          %s494 = scalar_lea.hbm %s3, %s493
          %s495 = sshll.u32 %s485, 4
          %s496 = int_to_ptr.vmem [resolvable:$true] %s495
          %501 = dma.vmem_to_hbm [thread:$0]  %s496, 256, %s494, %s482, 128, 128, 8
        $region48: #{tpu_custom_call.1} parent=31 // pred_fallthru
          _
      $region32: #{tpu_custom_call.1} parent=5 // pred_fallthru
        _
      %p502 = scmp.le.s32.totalorder 2, %s16
      // Predicated region
      $region49: #{tpu_custom_call.1} parent=5 // pred_check
        %p503 = pneg %p502
      $region50: #{tpu_custom_call.1} parent=5 // pred_check_branch
        %505 = sbr.rel (%p503) target = $region52
      $region51: #{tpu_custom_call.1} parent=5 // pred_region
        %s506 = ssub.s32 %s16, 2
        // Predicated region
        $region53: #{tpu_custom_call.1} parent=51 // pred_check
          %p507 = pneg %p113
        $region54: #{tpu_custom_call.1} parent=51 // pred_check_branch
          %509 = sbr.rel (%p507) target = $region56
        $region55: #{tpu_custom_call.1} parent=51 // pred_region
          %s510 = sand.u32 %s98, 1
          %s511 = scalar_lea.sflag [#allocation4], %s510
          %s512 = sand.u32 %s98, 1
          %s513 = smul.addr %s512, 16
          %s514 = scalar_lea.vmem [#allocation8], %s513
          %515 = dma.done %s511, 256
        $region56: #{tpu_custom_call.1} parent=51 // pred_fallthru
          _
      $region52: #{tpu_custom_call.1} parent=5 // pred_fallthru
        _
    $region6: #{tpu_custom_call.1} parent=1 // loop_footer
      %s20 = sadd.s32 1, %s16
    $region7: #{tpu_custom_call.1} parent=1 // loop_footer_branch
      %15 = sbr.rel target = $region3
    $region8: #{tpu_custom_call.1} parent=1 // loop_exit
      _
    %516 = vsyncpa [#allocation3], 1
    %s517 = scalar_lea.sflag [#allocation3], 1
    %518 = vsyncpa %s517, 1
    %519 = vsyncpa [#allocation6], 1
    %520 = vsyncpa [#allocation4], 1
    %s521 = scalar_lea.sflag [#allocation4], 1
    %522 = vsyncpa %s521, 1

</llo_original>
